<compile_context>
chip_gen: v6e
topology: v6e:2x2x1
jax: 0.10.0
libtpu: 0.0.40
codegen_flags: <defaults>
</compile_context>

<pallas_src>
import jax
import jax.numpy as jnp
import numpy as np
from jax.experimental import pallas as pl
from jax.experimental.pallas import tpu as pltpu


def _hbm_copy_kernel(x_ref, o_ref, sem):
    # Single HBM->HBM DMA: no VMEM staging, no grid loop, no VPU work.
    cp = pltpu.make_async_copy(x_ref, o_ref, sem)
    cp.start()
    cp.wait()


def _pallas_identity_copy(x):
    """Materialize a fresh copy of x with one device-side DMA."""
    return pl.pallas_call(
        _hbm_copy_kernel,
        out_shape=jax.ShapeDtypeStruct(x.shape, x.dtype),
        # Leave both operands in place (HBM) — no automatic tile pipeline.
        in_specs=[pl.BlockSpec(memory_space=pl.ANY)],
        out_specs=pl.BlockSpec(memory_space=pl.ANY),
        scratch_shapes=[pltpu.SemaphoreType.DMA(())],
    )(x)


def gcn_forward(x, adj=None, *, materialize=False):
    """Pallas equivalent of gcn.forward(x, adj) -> x (identity on x).

    materialize=False (default): elide the kernel — return x directly.
        This is the fastest possible implementation (zero HBM traffic).
    materialize=True: return a freshly allocated copy of x produced by a
        grid-less Pallas kernel that does one HBM->HBM DMA.
    """
    del adj  # the reference forward never touches adj — do NOT DMA it.
    if not materialize:
        return x
    return _pallas_identity_copy(x)


if __name__ == "__main__":
    key = jax.random.PRNGKey(0)
    kx, ka = jax.random.split(key)

    N, F = 256, 128        # 256 nodes, 128-dim (lane-aligned) features
    x = jax.random.normal(kx, (N, F), dtype=jnp.float32)
    adj = (jax.random.uniform(ka, (N, N)) > 0.5).astype(jnp.float32)

    expected = np.asarray(x)  # host copy for comparison

    # Preferred path: elided identity (zero-cost, review's #1 optimization).
    out_fast = jax.block_until_ready(gcn_forward(x, adj))
    assert out_fast.shape == expected.shape and out_fast.dtype == x.dtype
    assert np.array_equal(np.asarray(out_fast), expected)

    # Materialized path: exercise the Pallas kernel once on the TPU.
    out_copy = jax.block_until_ready(gcn_forward(x, adj, materialize=True))
    assert out_copy.shape == expected.shape and out_copy.dtype == x.dtype
    assert np.array_equal(np.asarray(out_copy), expected)

    print("KERNEL_OK")
</pallas_src>

<mosaic_0001>
module attributes {stable_mosaic.version = 11 : i64} {
  func.func @_hbm_copy_kernel(%arg0: memref<256x128xf32, #tpu.memory_space<any>>, %arg1: memref<256x128xf32, #tpu.memory_space<any>>, %arg2: memref<!tpu.dma_semaphore, #tpu.memory_space<semaphore_mem>>) attributes {dimension_semantics = [], scalar_prefetch = 0 : i64, scratch_operands = 1 : i64, tpu.core_type = #tpu.core_type<tc>} {
    tpu.enqueue_dma source(%arg0 : memref<256x128xf32, #tpu.memory_space<any>>) target(%arg1 : memref<256x128xf32, #tpu.memory_space<any>>) target_semaphore(%arg2 : memref<!tpu.dma_semaphore, #tpu.memory_space<semaphore_mem>>)
    tpu.wait_dma2 semaphore(%arg2 : memref<!tpu.dma_semaphore, #tpu.memory_space<semaphore_mem>>) src(%arg0 : memref<256x128xf32, #tpu.memory_space<any>>) dst(%arg1 : memref<256x128xf32, #tpu.memory_space<any>>)
    return
  }
}

</mosaic_0001>

<llo_original>
// kernel: tpu_custom_call.1
$region0: #{tpu_custom_call.1}
  #allocation0 [shape = 'u32[]', space=smem, size = 0x4, offset = 0x4, fixed_abs, tag = 'smem constant byte address 0x4 - core index']
  #allocation1 [shape = 'u32[144,128]{1,0:T(1,128)}', space=vmem, size = 0x12000, scoped, tag = 'internal scratch']
  #allocation2 [shape = 's32[1]{0}', space=sflag, size = 0x4, scoped, tag = 'scratch operand']
  #allocation3 [shape = 's32[]', space=sflag, size = 0x4, offset = 0, fixed_abs, tag = 'sflag constant byte address 0x0 - dummy sync flag']
  #allocation4 [shape = 'u32[0]{0}', space=smem, size = 0, offset = 0, fixed_abs, tag = 'smem constant byte address 0x0 - null']
  %s0 = inlined_call_operand.hbm [shape: f32[256,128], index: 0, kind: input, shape index: {}]
  %s1 = inlined_call_operand.hbm [shape: f32[256,128], index: 1, kind: output, shape index: {}]
  %s2 = sld [smem:[#allocation0]]
  $region2: #{tpu_custom_call.1} parent=0
    _
  %s4 = ssub.s32 1, %s2
  %s5 = scalar_select 0, %s4, %s2
  %s7 = sshll.u32 1, 14
  %s8 = sxor.u32 4294967295, %s7
  %12 = dma.general %s0, 4096, %s1, [#allocation2], 131072, [#allocation4], 0, 0
  %s13 = smul.u32 256, 1
  %s14 = sshll.u32 %s13, 4
  %15 = dma.done [#allocation2], %s14
  %16 = vsyncmov [#allocation2]
  %s17 = vpop.sfrf %16
  %p18 = scmp.eq.s32.totalorder %s17, 0
  %p19 = pneg %p18
  %21 = shalt.err (%p19)

</llo_original>
